<compile_context>
chip_gen: v5e
topology: v5e:2x2
jax: 0.10.0
libtpu: 0.0.40
codegen_flags: <defaults>
</compile_context>

<pallas_src>
import functools
import math

import jax
import jax.numpy as jnp
from jax.experimental import pallas as pl
from jax.experimental.pallas import tpu as pltpu


def _sum_all(a):
    """Two-step keepdims reduce of a 2-D tile -> (1, 1)."""
    return jnp.sum(jnp.sum(a, axis=-1, keepdims=True), axis=0, keepdims=True)


def _memory_unit_kernel(*refs, use_pos, use_skip, mem_size, block_b):
    if use_pos:
        x_ref, pos_ref, w_ref, out_ref, loss_ref = refs
    else:
        x_ref, w_ref, out_ref, loss_ref = refs
        pos_ref = None

    eps2 = 1e-24  # (F.normalize eps=1e-12)^2, applied to squared norms
    M = mem_size
    C = x_ref.shape[1]
    N = x_ref.shape[2]

    # -------- hoisted, shared across the Bt sub-batches --------------------------
    w = w_ref[...].astype(jnp.float32)                                 # (M, C)
    pos = pos_ref[0].astype(jnp.float32) if use_pos else None          # (C, N)
    row_i = jax.lax.broadcasted_iota(jnp.int32, (M, M), 0)
    col_i = jax.lax.broadcasted_iota(jnp.int32, (M, M), 1)
    upper = (col_i > row_i)                                            # strict upper tri
    lane = jax.lax.broadcasted_iota(jnp.int32, (1, 128), 1)
    lane0 = (lane == 0).astype(jnp.float32)
    lane1 = (lane == 1).astype(jnp.float32)
    dist_scale = 2.0 / (M * (M - 1))

    # TODO(synk): the first matmul could be issued once for all Bt sub-batches with key
    # laid out as (C, Bt*N); skipped here because that layout needs an in-VMEM relayout.
    for b in range(block_b):                # static unrolled loop over sub-batches
        key = x_ref[b].astype(jnp.float32)                             # (C, N)
        if use_pos:
            key = key + pos

        # ---- 1) contribution of each pixel to each prototype ---------------------
        pw = jnp.dot(w, key, preferred_element_type=jnp.float32)       # (M, N)
        pw = jnp.exp(pw - jnp.max(pw, axis=-1, keepdims=True))         # denom cancels

        # ---- 2) prototypes, L2-normalized over channels ---------------------------
        proto = jax.lax.dot_general(pw, key, (((1,), (1,)), ((), ())),
                                    preferred_element_type=jnp.float32)  # (M, C)
        inv_pn = jax.lax.rsqrt(
            jnp.maximum(jnp.sum(proto * proto, axis=-1, keepdims=True), eps2))
        proto = proto * inv_pn

        # ---- 3) score logits of each pixel against each prototype ----------------
        s = jnp.dot(proto, key, preferred_element_type=jnp.float32)    # (M, N)
        s_max = jnp.max(s, axis=0, keepdims=True)                      # (1, N)
        p = jnp.exp(s - s_max)                                         # denom cancels

        # ---- 4) reconstructed query (channels x pixels) ---------------------------
        new_q = jax.lax.dot_general(proto, p, (((0,), (0,)), ((), ())),
                                    preferred_element_type=jnp.float32)  # (C, N)
        inv_qn = jax.lax.rsqrt(
            jnp.maximum(jnp.sum(new_q * new_q, axis=0, keepdims=True), eps2))
        new_q = new_q * inv_qn
        if use_skip:
            new_q = new_q + key
        out_ref[b] = new_q.astype(out_ref.dtype)        # unmasked lane-dense store

        # ---- compact loss: analytic SSE against nearest prototype -----------------
        #   ||proto_m||^2 == 1 after normalization and s[argmax_n, n] == s_max[n]
        key_sq = _sum_all(key * key)                                   # (1, 1)
        sse = key_sq + float(N) - 2.0 * _sum_all(s_max)                # (1, 1)

        # ---- distance loss between prototypes --------------------------------------
        gram = jax.lax.dot_general(proto, proto, (((1,), (1,)), ((), ())),
                                   preferred_element_type=jnp.float32)  # (M, M)
        dis = 2.0 * gram - 1.0                      # 1 - pairwise_sq_dist (diag = 1)
        dis = jnp.where((dis > 0) & upper, dis, 0.0)
        dis_val = _sum_all(dis) * dist_scale                           # (1, 1)

        # ---- pack the two per-batch scalars into one lane-dense (1,128) row --------
        loss_ref[b] = sse * lane0 + dis_val * lane1


def _pick_block_b(B, per_batch_bytes, target_bytes=2 * 1024 * 1024):
    """Largest divisor of B with per-step footprint ~target, keeping >=2 grid steps."""
    cap = max(1, target_bytes // max(per_batch_bytes, 1))
    if B >= 2:
        cap = min(cap, B // 2)          # keep grid length >= 2 (v7x megacore sharding)
    cap = max(cap, 1)
    return max(d for d in range(1, B + 1) if B % d == 0 and d <= cap)


def memory_unit_forward(x_nchw, pos_embedding, mheads_weight, *,
                        pos=False, skip=False, block_b=None):
    """Pallas implementation of MemoryUnit_prototype.forward.

    x_nchw:        (B, C, H, W)   input feature map (NCHW, like the torch module)
    pos_embedding: (1, C, H, W)   learned positional embedding (only used if pos=True)
    mheads_weight: (M, C)         nn.Linear(fea_dim, mem_size, bias=False).weight
    Returns (new_query [B,C,H,W], compact_loss scalar, distance_loss scalar).
    """
    B, C, H, W = x_nchw.shape
    N = H * W
    M = mheads_weight.shape[0]

    # NCHW -> (B, C, N): contiguous reshape, no transpose / no dtype upcast.
    x = x_nchw.reshape(B, C, N)
    w = mheads_weight
    itemsize = jnp.dtype(x_nchw.dtype).itemsize

    if block_b is None:
        per_batch_bytes = 2 * C * N * itemsize          # input block + output block
        block_b = _pick_block_b(B, per_batch_bytes)
    assert B % block_b == 0, (B, block_b)
    grid_b = B // block_b

    # Explicit scoped-VMEM budget: double-buffered blocks + resident params + headroom,
    # clamped to [16 MiB, 32 MiB] (safe on v5e/v6e/v7x; v7x physical VMEM is 64 MiB).
    x_blk = block_b * C * N * itemsize
    out_blk = block_b * C * N * itemsize
    loss_blk = block_b * 128 * 4
    pos_blk = (C * N * jnp.dtype(pos_embedding.dtype).itemsize) if pos else 0
    w_blk = M * C * jnp.dtype(w.dtype).itemsize
    est = 2 * (x_blk + out_blk + loss_blk + pos_blk + w_blk)
    vmem_limit = int(min(32 * 1024 * 1024, max(16 * 1024 * 1024, 2 * est)))

    kernel = functools.partial(_memory_unit_kernel,
                               use_pos=pos, use_skip=skip,
                               mem_size=M, block_b=block_b)

    in_specs = [pl.BlockSpec((block_b, C, N), lambda b: (b, 0, 0))]     # x
    operands = [x]
    if pos:
        pos_flat = pos_embedding.reshape(1, C, N)
        in_specs.append(pl.BlockSpec((1, C, N), lambda b: (0, 0, 0)))   # pos (shared)
        operands.append(pos_flat)
    in_specs.append(pl.BlockSpec((M, C), lambda b: (0, 0)))             # Mheads weight
    operands.append(w)

    new_q, losses = pl.pallas_call(
        kernel,
        out_shape=(
            jax.ShapeDtypeStruct((B, C, N), x_nchw.dtype),
            jax.ShapeDtypeStruct((B, 1, 128), jnp.float32),
        ),
        grid_spec=pltpu.PrefetchScalarGridSpec(
            num_scalar_prefetch=0,
            grid=(grid_b,),
            in_specs=in_specs,
            out_specs=(
                pl.BlockSpec((block_b, C, N), lambda b: (b, 0, 0)),     # new_query
                pl.BlockSpec((block_b, 1, 128), lambda b: (b, 0, 0)),   # [SSE, dist]
            ),
        ),
        # grid steps are fully independent -> shard across TensorCores (v7x megacore)
        compiler_params=pltpu.CompilerParams(
            dimension_semantics=("parallel",),
            vmem_limit_bytes=vmem_limit,
        ),
    )(*operands)

    compact_loss = jnp.sum(losses[:, 0, 0]) / (B * N * C)   # MSELoss mean over elements
    distance_loss = jnp.mean(losses[:, 0, 1])               # mean over batch
    new_query = new_q.reshape(B, C, H, W)                   # free reshape, already NCHW
    return new_query, compact_loss, distance_loss


def memory_unit_reference(x_nchw, pos_embedding, mheads_weight, *, pos=False, skip=False):
    """Pure-JAX reference mirroring the PyTorch forward exactly (for validation)."""
    B, C, H, W = x_nchw.shape
    x = x_nchw + pos_embedding if pos else x_nchw
    key = jnp.transpose(x, (0, 2, 3, 1)).reshape(B, -1, C)
    query = key
    hp = jax.lax.Precision.HIGHEST
    pw = jnp.einsum('bnc,mc->bnm', key, mheads_weight, precision=hp)
    pw = jax.nn.softmax(pw, axis=1)
    proto = jnp.einsum('bnm,bnc->bmc', pw, key, precision=hp)
    proto = proto / jnp.maximum(jnp.linalg.norm(proto, axis=-1, keepdims=True), 1e-12)
    score = jnp.einsum('bnc,bmc->bnm', query, proto, precision=hp)
    score = jax.nn.softmax(score, axis=-1)
    new_q = jnp.einsum('bnm,bmc->bnc', score, proto, precision=hp)
    new_q = new_q / jnp.maximum(jnp.linalg.norm(new_q, axis=-1, keepdims=True), 1e-12)
    # compact loss
    idx = jnp.argmax(score, axis=-1)                                     # (B, N)
    gather_idx = jnp.broadcast_to(idx[:, :, None], (B, idx.shape[1], C))
    nearest = jnp.take_along_axis(proto, gather_idx, axis=1)
    compact_loss = jnp.mean((query - nearest) ** 2)
    # distance loss
    M = proto.shape[1]
    diff = proto[:, :, None, :] - proto[:, None, :, :]
    dis = 1.0 - jnp.sum(diff ** 2, axis=-1)
    dis = dis * (dis > 0)
    dis = dis * jnp.triu(jnp.ones((M, M), jnp.float32), k=1)
    dis_loss = jnp.mean(jnp.sum(dis, axis=(1, 2)) * 2.0 / (M * (M - 1)))
    if skip:
        new_q = new_q + query
    new_query = jnp.transpose(new_q.reshape(B, H, W, C), (0, 3, 1, 2))
    return new_query, compact_loss, dis_loss


if __name__ == "__main__":
    # Module hyper-parameters (small, consistent with the torch __init__):
    fea_map_size, mem_size, fea_dim = 16, 16, 32

    root = jax.random.PRNGKey(0)
    k_pos, k_w, k_x = jax.random.split(root, 3)

    # Deterministic parameter init matching __init__ / reset_parameters:
    pos_embedding = jax.random.normal(
        k_pos, (1, fea_dim, fea_map_size, fea_map_size), jnp.float32)      # randn
    stdv = 1.0 / math.sqrt(mem_size)
    mheads_weight = jax.random.uniform(
        k_w, (mem_size, fea_dim), jnp.float32, minval=-stdv, maxval=stdv)  # uniform(-stdv, stdv)

    ok = True
    # batch=2 exercises Bt=1 (grid=2); batch=8 exercises Bt=4 (grid=2, batched steps).
    for batch in (2, 8):
        x = jax.random.normal(
            jax.random.fold_in(k_x, batch),
            (batch, fea_dim, fea_map_size, fea_map_size), jnp.float32)
        for cfg in ({"pos": False, "skip": False}, {"pos": True, "skip": True}):
            new_q, cpt, dis = memory_unit_forward(x, pos_embedding, mheads_weight, **cfg)
            jax.block_until_ready((new_q, cpt, dis))
            r_q, r_cpt, r_dis = memory_unit_reference(x, pos_embedding, mheads_weight, **cfg)
            ok &= bool(jnp.allclose(new_q, r_q, atol=1e-2, rtol=1e-2))
            ok &= bool(jnp.allclose(cpt, r_cpt, atol=1e-2, rtol=1e-2))
            ok &= bool(jnp.allclose(dis, r_dis, atol=1e-2, rtol=1e-2))

    if ok:
        print("KERNEL_OK")
    else:
        print("MISMATCH vs pure-JAX reference")
</pallas_src>

<mosaic_0001>
module attributes {stable_mosaic.version = 11 : i64} {
  func.func @_memory_unit_kernel(%arg0: i32, %arg1: memref<1x32x256xf32, #tpu.memory_space<vmem>>, %arg2: memref<16x32xf32, #tpu.memory_space<vmem>>, %arg3: memref<1x32x256xf32, #tpu.memory_space<vmem>>, %arg4: memref<1x1x128xf32, #tpu.memory_space<vmem>>) attributes {dimension_semantics = [#tpu.dimension_semantics<parallel>], iteration_bounds = array<i64: 2>, scalar_prefetch = 0 : i64, scratch_operands = 0 : i64, tpu.core_type = #tpu.core_type<tc>, window_params = [{transform_indices = @transform_0, window_bounds = array<i64: 1, 32, 256>}, {pipeline_mode = #tpu.pipeline_mode<synchronous>, transform_indices = @transform_1, window_bounds = array<i64: 16, 32>}, {transform_indices = @transform_2, window_bounds = array<i64: 1, 32, 256>}, {transform_indices = @transform_3, window_bounds = array<i64: 1, 1, 128>}]} {
    %c0 = arith.constant 0 : index
    %c0_0 = arith.constant 0 : index
    %0 = vector.load %arg2[%c0, %c0_0] : memref<16x32xf32, #tpu.memory_space<vmem>>, vector<16x32xf32>
    %1 = tpu.iota {dimensions = array<i32: 0>} : vector<16x16xi32>
    %2 = tpu.iota {dimensions = array<i32: 1>} : vector<16x16xi32>
    %3 = arith.cmpi sgt, %2, %1 : vector<16x16xi32>
    %4 = tpu.iota {dimensions = array<i32: 1>} : vector<1x128xi32>
    %c0_i32 = arith.constant 0 : i32
    %5 = vector.broadcast %c0_i32 : i32 to vector<1x128xi32>
    %6 = arith.cmpi eq, %4, %5 : vector<1x128xi32>
    %7 = arith.extui %6 : vector<1x128xi1> to vector<1x128xi32>
    %8 = arith.sitofp %7 : vector<1x128xi32> to vector<1x128xf32>
    %c1_i32 = arith.constant 1 : i32
    %9 = vector.broadcast %c1_i32 : i32 to vector<1x128xi32>
    %10 = arith.cmpi eq, %4, %9 : vector<1x128xi32>
    %11 = arith.extui %10 : vector<1x128xi1> to vector<1x128xi32>
    %12 = arith.sitofp %11 : vector<1x128xi32> to vector<1x128xf32>
    %c0_1 = arith.constant 0 : index
    %c0_2 = arith.constant 0 : index
    %c0_3 = arith.constant 0 : index
    %13 = vector.load %arg1[%c0_1, %c0_2, %c0_3] : memref<1x32x256xf32, #tpu.memory_space<vmem>>, vector<1x32x256xf32>
    %14 = vector.shape_cast %13 : vector<1x32x256xf32> to vector<32x256xf32>
    %cst = arith.constant dense<0.000000e+00> : vector<16x256xf32>
    %15 = tpu.matmul %0, %14, %cst {dimension_numbers = #tpu.dot_dimension_numbers<[1], [0], [0], [1], [0, 0, 1, 1], [], []>} : vector<16x32xf32>, vector<32x256xf32>, vector<16x256xf32> -> vector<16x256xf32>
    %cst_4 = arith.constant dense<0xFF800000> : vector<16xf32>
    %16 = vector.multi_reduction <maximumf>, %15, %cst_4 [1] : vector<16x256xf32> to vector<16xf32>
    %17 = vector.shape_cast %16 : vector<16xf32> to vector<16x1xf32>
    %18 = vector.broadcast %17 : vector<16x1xf32> to vector<16x256xf32>
    %19 = arith.subf %15, %18 : vector<16x256xf32>
    %20 = math.exp %19 : vector<16x256xf32>
    %cst_5 = arith.constant dense<0.000000e+00> : vector<16x32xf32>
    %21 = tpu.matmul %20, %14, %cst_5 {dimension_numbers = #tpu.dot_dimension_numbers<[1], [1], [0], [0], [0, 0, 1, 0], [], []>} : vector<16x256xf32>, vector<32x256xf32>, vector<16x32xf32> -> vector<16x32xf32>
    %22 = arith.mulf %21, %21 : vector<16x32xf32>
    %cst_6 = arith.constant dense<0.000000e+00> : vector<16xf32>
    %23 = vector.multi_reduction <add>, %22, %cst_6 [1] : vector<16x32xf32> to vector<16xf32>
    %24 = vector.shape_cast %23 : vector<16xf32> to vector<16x1xf32>
    %cst_7 = arith.constant 1.000000e-24 : f32
    %25 = vector.broadcast %cst_7 : f32 to vector<16x1xf32>
    %26 = arith.maximumf %24, %25 : vector<16x1xf32>
    %27 = math.rsqrt %26 : vector<16x1xf32>
    %28 = vector.broadcast %27 : vector<16x1xf32> to vector<16x32xf32>
    %29 = arith.mulf %21, %28 : vector<16x32xf32>
    %cst_8 = arith.constant dense<0.000000e+00> : vector<16x256xf32>
    %30 = tpu.matmul %29, %14, %cst_8 {dimension_numbers = #tpu.dot_dimension_numbers<[1], [0], [0], [1], [0, 0, 1, 1], [], []>} : vector<16x32xf32>, vector<32x256xf32>, vector<16x256xf32> -> vector<16x256xf32>
    %cst_9 = arith.constant dense<0xFF800000> : vector<256xf32>
    %31 = vector.multi_reduction <maximumf>, %30, %cst_9 [0] : vector<16x256xf32> to vector<256xf32>
    %32 = vector.shape_cast %31 : vector<256xf32> to vector<1x256xf32>
    %33 = vector.broadcast %32 : vector<1x256xf32> to vector<16x256xf32>
    %34 = arith.subf %30, %33 : vector<16x256xf32>
    %35 = math.exp %34 : vector<16x256xf32>
    %cst_10 = arith.constant dense<0.000000e+00> : vector<32x256xf32>
    %36 = tpu.matmul %29, %35, %cst_10 {dimension_numbers = #tpu.dot_dimension_numbers<[0], [0], [1], [1], [0, 1, 1, 1], [], []>} : vector<16x32xf32>, vector<16x256xf32>, vector<32x256xf32> -> vector<32x256xf32>
    %37 = arith.mulf %36, %36 : vector<32x256xf32>
    %cst_11 = arith.constant dense<0.000000e+00> : vector<256xf32>
    %38 = vector.multi_reduction <add>, %37, %cst_11 [0] : vector<32x256xf32> to vector<256xf32>
    %39 = vector.shape_cast %38 : vector<256xf32> to vector<1x256xf32>
    %cst_12 = arith.constant 1.000000e-24 : f32
    %40 = vector.broadcast %cst_12 : f32 to vector<1x256xf32>
    %41 = arith.maximumf %39, %40 : vector<1x256xf32>
    %42 = math.rsqrt %41 : vector<1x256xf32>
    %43 = vector.broadcast %42 : vector<1x256xf32> to vector<32x256xf32>
    %44 = arith.mulf %36, %43 : vector<32x256xf32>
    %c0_13 = arith.constant 0 : index
    %c0_14 = arith.constant 0 : index
    %c0_15 = arith.constant 0 : index
    %45 = vector.load %arg3[%c0_13, %c0_14, %c0_15] : memref<1x32x256xf32, #tpu.memory_space<vmem>>, vector<1x32x256xf32>
    %46 = vector.shape_cast %45 : vector<1x32x256xf32> to vector<32x256xf32>
    %47 = vector.shape_cast %44 : vector<32x256xf32> to vector<1x32x256xf32>
    tpu.vector_store %arg3[%c0_13, %c0_14, %c0_15], %47 {strides = array<i32>} : memref<1x32x256xf32, #tpu.memory_space<vmem>>, vector<1x32x256xf32>,
    %48 = arith.mulf %14, %14 : vector<32x256xf32>
    %cst_16 = arith.constant dense<0.000000e+00> : vector<32xf32>
    %49 = vector.multi_reduction <add>, %48, %cst_16 [1] : vector<32x256xf32> to vector<32xf32>
    %50 = vector.shape_cast %49 : vector<32xf32> to vector<32x1xf32>
    %cst_17 = arith.constant dense<0.000000e+00> : vector<1xf32>
    %51 = vector.multi_reduction <add>, %50, %cst_17 [0] : vector<32x1xf32> to vector<1xf32>
    %52 = vector.shape_cast %51 : vector<1xf32> to vector<1x1xf32>
    %cst_18 = arith.constant 2.560000e+02 : f32
    %53 = vector.broadcast %cst_18 : f32 to vector<1x1xf32>
    %54 = arith.addf %52, %53 : vector<1x1xf32>
    %cst_19 = arith.constant dense<0.000000e+00> : vector<1xf32>
    %55 = vector.multi_reduction <add>, %32, %cst_19 [1] : vector<1x256xf32> to vector<1xf32>
    %56 = vector.shape_cast %55 : vector<1xf32> to vector<1x1xf32>
    %cst_20 = arith.constant dense<0.000000e+00> : vector<1xf32>
    %57 = vector.multi_reduction <add>, %56, %cst_20 [0] : vector<1x1xf32> to vector<1xf32>
    %58 = vector.shape_cast %57 : vector<1xf32> to vector<1x1xf32>
    %cst_21 = arith.constant 2.000000e+00 : f32
    %59 = vector.broadcast %cst_21 : f32 to vector<1x1xf32>
    %60 = arith.mulf %59, %58 : vector<1x1xf32>
    %61 = arith.subf %54, %60 : vector<1x1xf32>
    %cst_22 = arith.constant dense<0.000000e+00> : vector<16x16xf32>
    %62 = tpu.matmul %29, %29, %cst_22 {dimension_numbers = #tpu.dot_dimension_numbers<[1], [1], [0], [0], [0, 0, 1, 0], [], []>} : vector<16x32xf32>, vector<16x32xf32>, vector<16x16xf32> -> vector<16x16xf32>
    %cst_23 = arith.constant 2.000000e+00 : f32
    %63 = vector.broadcast %cst_23 : f32 to vector<16x16xf32>
    %64 = arith.mulf %63, %62 : vector<16x16xf32>
    %cst_24 = arith.constant 1.000000e+00 : f32
    %65 = vector.broadcast %cst_24 : f32 to vector<16x16xf32>
    %66 = arith.subf %64, %65 : vector<16x16xf32>
    %cst_25 = arith.constant 0.000000e+00 : f32
    %67 = vector.broadcast %cst_25 : f32 to vector<16x16xf32>
    %68 = arith.cmpf ogt, %66, %67 : vector<16x16xf32>
    %69 = arith.andi %68, %3 : vector<16x16xi1>
    %cst_26 = arith.constant 0.000000e+00 : f32
    %70 = vector.broadcast %cst_26 : f32 to vector<16x16xf32>
    %71 = arith.select %69, %66, %70 : vector<16x16xi1>, vector<16x16xf32>
    %cst_27 = arith.constant dense<0.000000e+00> : vector<16xf32>
    %72 = vector.multi_reduction <add>, %71, %cst_27 [1] : vector<16x16xf32> to vector<16xf32>
    %73 = vector.shape_cast %72 : vector<16xf32> to vector<16x1xf32>
    %cst_28 = arith.constant dense<0.000000e+00> : vector<1xf32>
    %74 = vector.multi_reduction <add>, %73, %cst_28 [0] : vector<16x1xf32> to vector<1xf32>
    %75 = vector.shape_cast %74 : vector<1xf32> to vector<1x1xf32>
    %cst_29 = arith.constant 0.00833333377 : f32
    %76 = vector.broadcast %cst_29 : f32 to vector<1x1xf32>
    %77 = arith.mulf %75, %76 : vector<1x1xf32>
    %78 = vector.broadcast %61 : vector<1x1xf32> to vector<1x128xf32>
    %79 = arith.mulf %78, %8 : vector<1x128xf32>
    %80 = vector.broadcast %77 : vector<1x1xf32> to vector<1x128xf32>
    %81 = arith.mulf %80, %12 : vector<1x128xf32>
    %82 = arith.addf %79, %81 : vector<1x128xf32>
    %c0_30 = arith.constant 0 : index
    %c0_31 = arith.constant 0 : index
    %c0_32 = arith.constant 0 : index
    %83 = vector.load %arg4[%c0_30, %c0_31, %c0_32] : memref<1x1x128xf32, #tpu.memory_space<vmem>>, vector<1x1x128xf32>
    %84 = vector.shape_cast %83 : vector<1x1x128xf32> to vector<1x128xf32>
    %85 = vector.shape_cast %82 : vector<1x128xf32> to vector<1x1x128xf32>
    tpu.vector_store %arg4[%c0_30, %c0_31, %c0_32], %85 {strides = array<i32>} : memref<1x1x128xf32, #tpu.memory_space<vmem>>, vector<1x1x128xf32>,
    return
  }
  func.func @transform_0(%arg0: i32) -> (i32, i32, i32) {
    %c0_i32 = arith.constant 0 : i32
    %c0_i32_0 = arith.constant 0 : i32
    %c0_i32_1 = arith.constant 0 : i32
    return %arg0, %c0_i32, %c0_i32_0 : i32, i32, i32
  }
  func.func @transform_1(%arg0: i32) -> (i32, i32) {
    %c0_i32 = arith.constant 0 : i32
    %c0_i32_0 = arith.constant 0 : i32
    %c0_i32_1 = arith.constant 0 : i32
    return %c0_i32, %c0_i32_0 : i32, i32
  }
  func.func @transform_2(%arg0: i32) -> (i32, i32, i32) {
    %c0_i32 = arith.constant 0 : i32
    %c0_i32_0 = arith.constant 0 : i32
    %c0_i32_1 = arith.constant 0 : i32
    return %arg0, %c0_i32, %c0_i32_0 : i32, i32, i32
  }
  func.func @transform_3(%arg0: i32) -> (i32, i32, i32) {
    %c0_i32 = arith.constant 0 : i32
    %c0_i32_0 = arith.constant 0 : i32
    %c0_i32_1 = arith.constant 0 : i32
    return %arg0, %c0_i32, %c0_i32_0 : i32, i32, i32
  }
}

</mosaic_0001>

<llo_original>
// kernel: tpu_custom_call.1
$region0: #{tpu_custom_call.1}
  #allocation0 [shape = 'u32[]', space=smem, size = 0x4, offset = 0x4, fixed_abs, tag = 'smem constant byte address 0x4 - core index']
  #allocation1 [shape = 'u32[72,128]{1,0:T(1,128)}', space=vmem, size = 0x9000, scoped, tag = 'internal scratch']
  %s0 = inlined_call_operand.hbm [shape: f32[2,32,256], index: 0, kind: input, shape index: {}]
  %s1 = inlined_call_operand.hbm [shape: f32[16,32], index: 1, kind: input, shape index: {}]
  %s2 = inlined_call_operand.hbm [shape: f32[2,32,256], index: 2, kind: output, shape index: {0}]
  %s3 = inlined_call_operand.hbm [shape: f32[2,1,128], index: 3, kind: output, shape index: {1}]
  %4 = xla_tuple %s2, %s3
  %s5 = sld [smem:[#allocation0]]
  $region57: #{tpu_custom_call.1} parent=0
    _
  %s7 = ssub.s32 1, %s5
  %s8 = scalar_select 0, %s7, %s5
  $region1: #{tpu_custom_call.1} parent=0
    #allocation2 [shape = 'u8[65536]{0}', space=vmem, size = 0x10000, scoped, tag = 'input window, operand 0']
    #allocation3 [shape = 's32[2]{0}', space=sflag, size = 0x8, scoped, tag = 'scoped memory for tpu_custom_call.1']
    #allocation4 [shape = 's32[2]{0}', space=sflag, size = 0x8, scoped, tag = 'scoped memory for tpu_custom_call.1']
    #allocation5 [shape = 'u8[8192]{0}', space=vmem, size = 0x2000, scoped, tag = 'input window, operand 1, single buffered']
    #allocation6 [shape = 's32[1]{0}', space=sflag, size = 0x4, scoped, tag = 'scoped memory for tpu_custom_call.1']
    #allocation7 [shape = 'u8[65536]{0}', space=vmem, size = 0x10000, scoped, tag = 'output window, operand 0']
    #allocation8 [shape = 'u8[1024]{0}', space=vmem, size = 0x400, scoped, tag = 'output window, operand 1']
    #allocation9 [shape = 's32[2]{0}', space=sflag, size = 0x8, scoped, tag = 'scoped memory for tpu_custom_call.1']
    %9 = vsyncpa [#allocation3], 0
    %s10 = scalar_lea.sflag [#allocation3], 1
    %11 = vsyncpa %s10, 0
    %12 = vsyncpa [#allocation6], 0
    %13 = vsyncpa [#allocation4], 0
    %s14 = scalar_lea.sflag [#allocation4], 1
    %15 = vsyncpa %s14, 0
    %16 = vsyncpa [#allocation9], 0
    %s17 = scalar_lea.sflag [#allocation9], 1
    %18 = vsyncpa %s17, 0
    loop: start=0, step=1, limit=4
    $region2: #{tpu_custom_call.1} parent=1 // loop_pre_header
      _
    $region3: #{tpu_custom_call.1} parent=1 // loop_header
      %s20 = sphi 0, %s24
      %p21 = scmp.ge.s32.totalorder %s20, 4
      %s30 = sphi 0, %s32
      %s33 = sphi 0, %s30
      %s34 = sphi 0, %s33
      %s50 = sphi 0, %s34
      %s54 = sphi 0, %s54
      %s56 = sphi 0, %s54
      %s57 = sphi 0, %s56
      %s71 = sphi 0, %s57
      %s77 = sphi 0, %s79
      %s80 = sphi 0, %s77
      %s81 = sphi 0, %s80
      %s97 = sphi 0, %s81
      %s103 = sphi 0, %s105
      %s106 = sphi 0, %s103
      %s107 = sphi 0, %s106
      %s123 = sphi 0, %s107
    $region4: #{tpu_custom_call.1} parent=1 // loop_header_branch
      %23 = sbr.rel (%p21) target = $region8
    $region5: #{tpu_custom_call.1} parent=1 // loop_body
      %s25 = ssub.s32 %s20, 1
      %s26 = ssub.s32 %s20, 2
      %s27 = sadd.s32 %s20, 1
      %s28 = ssub.s32 %s20, %s27
      %p29 = scmp.eq.s32.totalorder %s28, 0
      %s31 = sadd.s32 %s30, 1
      %s32 = scalar_select %p29, %s30, %s31
      %p35 = pneg %p29
      %p36 = scmp.eq.s32.totalorder %s20, 1
      %p37 = por %p35, %p36
      %p38 = scmp.ne.s32.totalorder %s30, %s33
      %p39 = scmp.eq.s32.totalorder %s20, 0
      %p40 = por %p38, %p39
      %p41 = scmp.ne.s32.totalorder %s30, %s33
      %p42 = scmp.eq.s32.totalorder %s25, 1
      %p43 = por %p41, %p42
      %p44 = scmp.ne.s32.totalorder %s33, %s34
      %p45 = scmp.eq.s32.totalorder %s25, 0
      %p46 = por %p44, %p45
      %p47 = scmp.ne.s32.totalorder %s33, %s34
      %p48 = scmp.eq.s32.totalorder %s26, 1
      %p49 = por %p47, %p48
      %p51 = scmp.ne.s32.totalorder %s34, %s50
      %p52 = scmp.eq.s32.totalorder %s26, 0
      %p53 = por %p51, %p52
      %s55 = sadd.s32 %s54, 1
      %p58 = scmp.eq.s32.totalorder %s20, 1
      %p59 = scmp.ne.s32.totalorder %s54, %s56
      %p60 = scmp.eq.s32.totalorder %s20, 0
      %p61 = por %p59, %p60
      %p62 = scmp.ne.s32.totalorder %s54, %s56
      %p63 = scmp.eq.s32.totalorder %s25, 1
      %p64 = por %p62, %p63
      %p65 = scmp.ne.s32.totalorder %s56, %s57
      %p66 = scmp.eq.s32.totalorder %s25, 0
      %p67 = por %p65, %p66
      %p68 = scmp.ne.s32.totalorder %s56, %s57
      %p69 = scmp.eq.s32.totalorder %s26, 1
      %p70 = por %p68, %p69
      %p72 = scmp.ne.s32.totalorder %s57, %s71
      %p73 = scmp.eq.s32.totalorder %s26, 0
      %p74 = por %p72, %p73
      %s75 = ssub.s32 %s20, %s27
      %p76 = scmp.eq.s32.totalorder %s75, 0
      %s78 = sadd.s32 %s77, 1
      %s79 = scalar_select %p76, %s77, %s78
      %p82 = pneg %p76
      %p83 = scmp.eq.s32.totalorder %s20, 1
      %p84 = por %p82, %p83
      %p85 = scmp.ne.s32.totalorder %s77, %s80
      %p86 = scmp.eq.s32.totalorder %s20, 0
      %p87 = por %p85, %p86
      %p88 = scmp.ne.s32.totalorder %s77, %s80
      %p89 = scmp.eq.s32.totalorder %s25, 1
      %p90 = por %p88, %p89
      %p91 = scmp.ne.s32.totalorder %s80, %s81
      %p92 = scmp.eq.s32.totalorder %s25, 0
      %p93 = por %p91, %p92
      %p94 = scmp.ne.s32.totalorder %s80, %s81
      %p95 = scmp.eq.s32.totalorder %s26, 1
      %p96 = por %p94, %p95
      %p98 = scmp.ne.s32.totalorder %s81, %s97
      %p99 = scmp.eq.s32.totalorder %s26, 0
      %p100 = por %p98, %p99
      %s101 = ssub.s32 %s20, %s27
      %p102 = scmp.eq.s32.totalorder %s101, 0
      %s104 = sadd.s32 %s103, 1
      %s105 = scalar_select %p102, %s103, %s104
      %p108 = pneg %p102
      %p109 = scmp.eq.s32.totalorder %s20, 1
      %p110 = por %p108, %p109
      %p111 = scmp.ne.s32.totalorder %s103, %s106
      %p112 = scmp.eq.s32.totalorder %s20, 0
      %p113 = por %p111, %p112
      %p114 = scmp.ne.s32.totalorder %s103, %s106
      %p115 = scmp.eq.s32.totalorder %s25, 1
      %p116 = por %p114, %p115
      %p117 = scmp.ne.s32.totalorder %s106, %s107
      %p118 = scmp.eq.s32.totalorder %s25, 0
      %p119 = por %p117, %p118
      %p120 = scmp.ne.s32.totalorder %s106, %s107
      %p121 = scmp.eq.s32.totalorder %s26, 1
      %p122 = por %p120, %p121
      %p124 = scmp.ne.s32.totalorder %s107, %s123
      %p125 = scmp.eq.s32.totalorder %s26, 0
      %p126 = por %p124, %p125
      %p127 = scmp.le.s32.totalorder 1, %s20
      %p128 = scmp.lt.s32.totalorder %s20, 3
      %p129 = pnand %p127, %p128
      %p130 = pneg %p129
      // Predicated region
      $region9: #{tpu_custom_call.1} parent=5 // pred_check
        _
      $region10: #{tpu_custom_call.1} parent=5 // pred_check_branch
        %132 = sbr.rel (%p129) target = $region12
      $region11: #{tpu_custom_call.1} parent=5 // pred_region
        %s133 = ssub.s32 %s20, 1
        // Predicated region
        $region13: #{tpu_custom_call.1} parent=11 // pred_check
          %p134 = pneg %p67
        $region14: #{tpu_custom_call.1} parent=11 // pred_check_branch
          %136 = sbr.rel (%p134) target = $region16
        $region15: #{tpu_custom_call.1} parent=11 // pred_region
          %138 = vsyncadd [#allocation6], 0
          %s139 = sshll.u32 %s1, 4
          %s140 = int_to_ptr.hbm [resolvable:$true] %s139
          %s141 = sshll.u32 [#allocation5], 4
          %s142 = int_to_ptr.vmem [resolvable:$true] %s141
          %147 = dma.hbm_to_vmem [thread:$0]  %s140, 256, %s142, [#allocation6], 128, 128, 8
        $region16: #{tpu_custom_call.1} parent=11 // pred_fallthru
          _
      $region12: #{tpu_custom_call.1} parent=5 // pred_fallthru
        _
      %p148 = scmp.lt.s32.totalorder %s20, 2
      // Predicated region
      $region17: #{tpu_custom_call.1} parent=5 // pred_check
        %p149 = pneg %p148
      $region18: #{tpu_custom_call.1} parent=5 // pred_check_branch
        %151 = sbr.rel (%p149) target = $region20
      $region19: #{tpu_custom_call.1} parent=5 // pred_region
        // Predicated region
        $region21: #{tpu_custom_call.1} parent=19 // pred_check
          %p152 = pneg %p40
        $region22: #{tpu_custom_call.1} parent=19 // pred_check_branch
          %154 = sbr.rel (%p152) target = $region24
        $region23: #{tpu_custom_call.1} parent=19 // pred_region
          %s155 = sand.u32 %s30, 1
          %s156 = scalar_lea.sflag [#allocation3], %s155
          %s157 = sand.u32 %s30, 1
          %s158 = smul.addr %s157, 64
          %s159 = scalar_lea.vmem [#allocation2], %s158
          %161 = vsyncadd %s156, 0
          %s162 = smul.addr %s20, 8
          %s163 = smul.addr %s162, 8
          %s164 = scalar_lea.hbm %s0, %s163
          %s165 = sshll.u32 %s164, 4
          %s166 = int_to_ptr.hbm [resolvable:$true] %s165
          %s167 = sshll.u32 %s159, 4
          %s168 = int_to_ptr.vmem [resolvable:$true] %s167
          %173 = dma.hbm_to_vmem [thread:$0]  %s166, 1024, %s168, %s156, 256, 256, 16
        $region24: #{tpu_custom_call.1} parent=19 // pred_fallthru
          _
      $region20: #{tpu_custom_call.1} parent=5 // pred_fallthru
        _
      %p174 = scmp.le.s32.totalorder 1, %s20
      %p175 = scmp.lt.s32.totalorder %s20, 3
      %p176 = pnand %p174, %p175
      %p177 = pneg %p176
      // Predicated region
      $region25: #{tpu_custom_call.1} parent=5 // pred_check
        _
      $region26: #{tpu_custom_call.1} parent=5 // pred_check_branch
        %179 = sbr.rel (%p176) target = $region28
      $region27: #{tpu_custom_call.1} parent=5 // pred_region
        %s180 = ssub.s32 %s20, 1
        %s181 = sand.u32 %s33, 1
        %s182 = scalar_lea.sflag [#allocation3], %s181
        %s183 = sand.u32 %s33, 1
        %s184 = smul.addr %s183, 64
        %s185 = scalar_lea.vmem [#allocation2], %s184
        // Predicated region
        $region29: #{tpu_custom_call.1} parent=27 // pred_check
          %p186 = pneg %p46
        $region30: #{tpu_custom_call.1} parent=27 // pred_check_branch
          %188 = sbr.rel (%p186) target = $region32
        $region31: #{tpu_custom_call.1} parent=27 // pred_region
          %190 = dma.done %s182, 1024
        $region32: #{tpu_custom_call.1} parent=27 // pred_fallthru
          _
        // Predicated region
        $region33: #{tpu_custom_call.1} parent=27 // pred_check
          %p191 = pneg %p67
        $region34: #{tpu_custom_call.1} parent=27 // pred_check_branch
          %193 = sbr.rel (%p191) target = $region36
        $region35: #{tpu_custom_call.1} parent=27 // pred_region
          %195 = dma.done [#allocation6], 256
        $region36: #{tpu_custom_call.1} parent=27 // pred_fallthru
          _
        %s196 = sand.u32 %s33, 1
        %s197 = scalar_lea.sflag [#allocation3], %s196
        %s198 = sand.u32 %s33, 1
        %s199 = smul.addr %s198, 64
        %s200 = scalar_lea.vmem [#allocation2], %s199
        %p201 = pneg %p46
        %p202 = pneg %p43
        %p203 = pneg %p67
        %p204 = pneg %p64
        %p205 = pneg %p93
        %p206 = pneg %p90
        %s207 = sand.u32 %s80, 1
        %s208 = scalar_lea.sflag [#allocation4], %s207
        %s209 = sand.u32 %s80, 1
        %s210 = smul.addr %s209, 64
        %s211 = scalar_lea.vmem [#allocation7], %s210
        %p212 = pneg %p119
        %p213 = pneg %p116
        %s214 = sand.u32 %s106, 1
        %s215 = scalar_lea.sflag [#allocation9], %s214
        %s216 = sand.u32 %s106, 1
        %s217 = scalar_lea.vmem [#allocation8], %s216
        %v218 = vld [vmem:[#allocation5] sm:$0xff]
        %v219 = vld [vmem:[#allocation5 + $0x8] sm:$0xff]
        %v220 = vlaneseq
        %v221 = vshrl.u32 %v220, 7
        %v222 = vadd.s32 %v221, 8
        %v223 = vlaneseq
        %v224 = vand.u32 %v223, 127
        %vm225 = vcmp.gt.s32.totalorder %v224, %v221
        %vm226 = vcmp.gt.s32.totalorder %v224, %v222
        %vm227 = vcmp.eq.s32.totalorder %v224, 0
        %v228 = vsel %vm227, 1, 0
        %v229 = vcvt.s32.f32 %v228
        %vm230 = vcmp.eq.s32.totalorder %v224, 1
        %v231 = vsel %vm230, 1, 0
        %v232 = vcvt.s32.f32 %v231
        %v233 = vld [vmem:[%s185] sm:$0xff]
        %v234 = vld [vmem:[%s185 + $0x8] sm:$0xff]
        %v235 = vld [vmem:[%s185 + $0x10] sm:$0xff]
        %v236 = vld [vmem:[%s185 + $0x18] sm:$0xff]
        %v237 = vld [vmem:[%s185 + $0x20] sm:$0xff]
        %v238 = vld [vmem:[%s185 + $0x28] sm:$0xff]
        %v239 = vld [vmem:[%s185 + $0x30] sm:$0xff]
        %v240 = vld [vmem:[%s185 + $0x38] sm:$0xff]
        %vm241 = vcmask 261120
        %v243 = vsel %vm241, %v218, 0
        %v246 = vsel %vm241, %v219, 0
        %248 = vmatpush.msra.mxu0 0.0
        %249 = vmatpush.msra.mxu0 0.0
        %250 = vmatpush.msra.mxu0 0.0
        %251 = vmatpush.msra.mxu0 0.0
        %252 = vmatpush.msra.mxu0 0.0
        %253 = vmatpush.msra.mxu0 0.0
        %254 = vmatpush.msra.mxu0 0.0
        %255 = vmatpush.msra.mxu0 0.0
        %256 = vmatpush.msra.mxu0 0.0
        %257 = vmatpush.msra.mxu0 0.0
        %258 = vmatpush.msra.mxu0 0.0
        %259 = vmatpush.msra.mxu0 0.0
        %260 = vmatpush.msra.mxu0 %v239
        %261 = vmatpush.msra.mxu0 %v237
        %262 = vmatpush.msra.mxu0 %v235
        %263 = vmatpush.msra.mxu0 %v233
        %264 = vmatmul.f32.gmra.mxu0 %v243
        %v265 = vpop.f32.mrf.mxu0
        %v266 = vadd.f32 0.0, %v265
        %267 = vmatmul.f32.gmra.mxu0 %v246
        %v268 = vpop.f32.mrf.mxu0
        %v269 = vadd.f32 0.0, %v268
        %270 = vdwg.mxu0
        %271 = vmatpush.msra.mxu0 0.0
        %272 = vmatpush.msra.mxu0 0.0
        %273 = vmatpush.msra.mxu0 0.0
        %274 = vmatpush.msra.mxu0 0.0
        %275 = vmatpush.msra.mxu0 0.0
        %276 = vmatpush.msra.mxu0 0.0
        %277 = vmatpush.msra.mxu0 0.0
        %278 = vmatpush.msra.mxu0 0.0
        %279 = vmatpush.msra.mxu0 0.0
        %280 = vmatpush.msra.mxu0 0.0
        %281 = vmatpush.msra.mxu0 0.0
        %282 = vmatpush.msra.mxu0 0.0
        %283 = vmatpush.msra.mxu0 %v240
        %284 = vmatpush.msra.mxu0 %v238
        %285 = vmatpush.msra.mxu0 %v236
        %286 = vmatpush.msra.mxu0 %v234
        %287 = vmatmul.f32.gmra.mxu0 %v243
        %v288 = vpop.f32.mrf.mxu0
        %v289 = vadd.f32 0.0, %v288
        %290 = vmatmul.f32.gmra.mxu0 %v246
        %v291 = vpop.f32.mrf.mxu0
        %v292 = vadd.f32 0.0, %v291
        %293 = vdwg.mxu0
        %v294 = vmax.f32 %v266, %v289
        %295 = vmax.xlane.f32.xlu0 %v294
        %v296 = vpop.xlane.xlu0 %295
        %v297 = vmax.f32 %v269, %v292
        %298 = vmax.xlane.f32.xlu0 %v297
        %v299 = vpop.xlane.xlu0 %298
        %v300 = vsub.f32 %v266, %v296
        %v301 = vsub.f32 %v289, %v296
        %v302 = vsub.f32 %v269, %v299
        %v303 = vsub.f32 %v292, %v299
        %v304 = vmul.f32 %v300, 1.442695
        %v305 = vpow.pop %v304
        %v306 = vmul.f32 %v301, 1.442695
        %v307 = vpow.pop %v306
        %v308 = vmul.f32 %v302, 1.442695
        %v309 = vpow.pop %v308
        %v310 = vmul.f32 %v303, 1.442695
        %v311 = vpow.pop %v310
        %312 = vmatpush.xpose.msra.mxu0 0.0
        %313 = vmatpush.xpose.msra.mxu0 0.0
        %314 = vmatpush.xpose.msra.mxu0 0.0
        %315 = vmatpush.xpose.msra.mxu0 0.0
        %316 = vmatpush.xpose.msra.mxu0 0.0
        %317 = vmatpush.xpose.msra.mxu0 0.0
        %318 = vmatpush.xpose.msra.mxu0 0.0
        %319 = vmatpush.xpose.msra.mxu0 0.0
        %320 = vmatpush.xpose.msra.mxu0 0.0
        %321 = vmatpush.xpose.msra.mxu0 0.0
        %322 = vmatpush.xpose.msra.mxu0 0.0
        %323 = vmatpush.xpose.msra.mxu0 0.0
        %324 = vmatpush.xpose.msra.mxu0 %v239
        %325 = vmatpush.xpose.msra.mxu0 %v237
        %326 = vmatpush.xpose.msra.mxu0 %v235
        %327 = vmatpush.xpose.msra.mxu0 %v233
        %328 = vmatmul.f32.gmra.mxu0 %v305
        %v329 = vpop.f32.mrf.mxu0
        %v330 = vadd.f32 0.0, %v329
        %331 = vmatmul.f32.gmra.mxu0 %v309
        %v332 = vpop.f32.mrf.mxu0
        %v333 = vadd.f32 0.0, %v332
        %334 = vdwg.mxu0
        %335 = vmatpush.xpose.msra.mxu0 0.0
        %336 = vmatpush.xpose.msra.mxu0 0.0
        %337 = vmatpush.xpose.msra.mxu0 0.0
        %338 = vmatpush.xpose.msra.mxu0 0.0
        %339 = vmatpush.xpose.msra.mxu0 0.0
        %340 = vmatpush.xpose.msra.mxu0 0.0
        %341 = vmatpush.xpose.msra.mxu0 0.0
        %342 = vmatpush.xpose.msra.mxu0 0.0
        %343 = vmatpush.xpose.msra.mxu0 0.0
        %344 = vmatpush.xpose.msra.mxu0 0.0
        %345 = vmatpush.xpose.msra.mxu0 0.0
        %346 = vmatpush.xpose.msra.mxu0 0.0
        %347 = vmatpush.xpose.msra.mxu0 %v240
        %348 = vmatpush.xpose.msra.mxu0 %v238
        %349 = vmatpush.xpose.msra.mxu0 %v236
        %350 = vmatpush.xpose.msra.mxu0 %v234
        %351 = vmatmul.f32.gmra.mxu0 %v307
        %v352 = vpop.f32.mrf.mxu0
        %v353 = vadd.f32 %v330, %v352
        %354 = vmatmul.f32.gmra.mxu0 %v311
        %v355 = vpop.f32.mrf.mxu0
        %v356 = vadd.f32 %v333, %v355
        %357 = vdwg.mxu0
        %v358 = vmul.f32 %v353, %v353
        %v359 = vmul.f32 %v356, %v356
        %v360 = vsel %vm241, %v358, 0.0
        %361 = vadd.xlane.f32.xlu0 %v360
        %v362 = vpop.xlane.xlu0 %361
        %v363 = vsel %vm241, %v359, 0.0
        %364 = vadd.xlane.f32.xlu0 %v363
        %v365 = vpop.xlane.xlu0 %364
        %v366 = vmax.f32 %v362, 1e-24
        %v367 = vmax.f32 %v365, 1e-24
        %v368 = vrsqrt.pop %v366
        %v369 = vmul.f32 %v368, %v366
        %v370 = vmul.f32 %v369, %v368
        %v371 = vmul.f32 0.5, %v370
        %v372 = vsub.f32 1.5, %v371
        %v373 = vmul.f32 %v368, %v372
        %vm374 = vweird.f32 %v366
        %vm375 = vweird.f32 %v368
        %vm376 = vmor %vm374, %vm375
        %v377 = vsel %vm376, %v368, %v373
        %v378 = vrsqrt.pop %v367
        %v379 = vmul.f32 %v378, %v367
        %v380 = vmul.f32 %v379, %v378
        %v381 = vmul.f32 0.5, %v380
        %v382 = vsub.f32 1.5, %v381
        %v383 = vmul.f32 %v378, %v382
        %vm384 = vweird.f32 %v367
        %vm385 = vweird.f32 %v378
        %vm386 = vmor %vm384, %vm385
        %v387 = vsel %vm386, %v378, %v383
        %v388 = vmul.f32 %v353, %v377
        %v389 = vmul.f32 %v356, %v387
        %v391 = vsel %vm241, %v388, 0
        %v394 = vsel %vm241, %v389, 0
        %396 = vmatpush.msra.mxu0 0.0
        %397 = vmatpush.msra.mxu0 0.0
        %398 = vmatpush.msra.mxu0 0.0
        %399 = vmatpush.msra.mxu0 0.0
        %400 = vmatpush.msra.mxu0 0.0
        %401 = vmatpush.msra.mxu0 0.0
        %402 = vmatpush.msra.mxu0 0.0
        %403 = vmatpush.msra.mxu0 0.0
        %404 = vmatpush.msra.mxu0 0.0
        %405 = vmatpush.msra.mxu0 0.0
        %406 = vmatpush.msra.mxu0 0.0
        %407 = vmatpush.msra.mxu0 0.0
        %408 = vmatpush.msra.mxu0 %v239
        %409 = vmatpush.msra.mxu0 %v237
        %410 = vmatpush.msra.mxu0 %v235
        %411 = vmatpush.msra.mxu0 %v233
        %412 = vmatmul.f32.gmra.mxu0 %v391
        %v413 = vpop.f32.mrf.mxu0
        %v414 = vadd.f32 0.0, %v413
        %415 = vmatmul.f32.gmra.mxu0 %v394
        %v416 = vpop.f32.mrf.mxu0
        %v417 = vadd.f32 0.0, %v416
        %418 = vdwg.mxu0
        %419 = vmatpush.msra.mxu0 0.0
        %420 = vmatpush.msra.mxu0 0.0
        %421 = vmatpush.msra.mxu0 0.0
        %422 = vmatpush.msra.mxu0 0.0
        %423 = vmatpush.msra.mxu0 0.0
        %424 = vmatpush.msra.mxu0 0.0
        %425 = vmatpush.msra.mxu0 0.0
        %426 = vmatpush.msra.mxu0 0.0
        %427 = vmatpush.msra.mxu0 0.0
        %428 = vmatpush.msra.mxu0 0.0
        %429 = vmatpush.msra.mxu0 0.0
        %430 = vmatpush.msra.mxu0 0.0
        %431 = vmatpush.msra.mxu0 %v240
        %432 = vmatpush.msra.mxu0 %v238
        %433 = vmatpush.msra.mxu0 %v236
        %434 = vmatpush.msra.mxu0 %v234
        %435 = vmatmul.f32.gmra.mxu0 %v391
        %v436 = vpop.f32.mrf.mxu0
        %v437 = vadd.f32 0.0, %v436
        %438 = vmatmul.f32.gmra.mxu0 %v394
        %v439 = vpop.f32.mrf.mxu0
        %v440 = vadd.f32 0.0, %v439
        %441 = vdwg.mxu0
        %v442 = vmax.f32 %v414, %v417
        %v443 = vrot.slane %v442, 4
        %v444 = vmax.f32 %v442, %v443
        %v445 = vrot.slane %v444, 2
        %v446 = vmax.f32 %v444, %v445
        %v447 = vrot.slane %v446, 1
        %v448 = vmax.f32 %v446, %v447
        %v449 = vmax.f32 %v437, %v440
        %v450 = vrot.slane %v449, 4
        %v451 = vmax.f32 %v449, %v450
        %v452 = vrot.slane %v451, 2
        %v453 = vmax.f32 %v451, %v452
        %v454 = vrot.slane %v453, 1
        %v455 = vmax.f32 %v453, %v454
        %v456 = vsub.f32 %v414, %v448
        %v457 = vsub.f32 %v437, %v455
        %v458 = vsub.f32 %v417, %v448
        %v459 = vsub.f32 %v440, %v455
        %v460 = vmul.f32 %v456, 1.442695
        %v461 = vpow.pop %v460
        %v462 = vmul.f32 %v457, 1.442695
        %v463 = vpow.pop %v462
        %v464 = vmul.f32 %v458, 1.442695
        %v465 = vpow.pop %v464
        %v466 = vmul.f32 %v459, 1.442695
        %v467 = vpow.pop %v466
        %468 = vxpose.xlu0.b32.start [1/16] %v388, 128
        %469 = vxpose.xlu0.b32.cont [2/16] %v389, 128
        %470 = vxpose.xlu0.b32.cont [3/16] 0.0, 128
        %471 = vxpose.xlu0.b32.cont [4/16] 0.0, 128
        %472 = vxpose.xlu0.b32.cont [5/16] 0.0, 128
        %473 = vxpose.xlu0.b32.cont [6/16] 0.0, 128
        %474 = vxpose.xlu0.b32.cont [7/16] 0.0, 128
        %475 = vxpose.xlu0.b32.cont [8/16] 0.0, 128
        %476 = vxpose.xlu0.b32.cont [9/16] 0.0, 128
        %477 = vxpose.xlu0.b32.cont [10/16] 0.0, 128
        %478 = vxpose.xlu0.b32.cont [11/16] 0.0, 128
        %479 = vxpose.xlu0.b32.cont [12/16] 0.0, 128
        %480 = vxpose.xlu0.b32.cont [13/16] 0.0, 128
        %481 = vxpose.xlu0.b32.cont [14/16] 0.0, 128
        %482 = vxpose.xlu0.b32.cont [15/16] 0.0, 128
        %483 = vxpose.xlu0.b32.end [16/16] 0.0, 128
        %v484 = vpop.trf.xlu0
        %v485 = vpop.trf.xlu0
        %v486 = vpop.trf.xlu0
        %v487 = vpop.trf.xlu0
        %v488 = vpop.trf.xlu0
        %v489 = vpop.trf.xlu0
        %v490 = vpop.trf.xlu0
        %v491 = vpop.trf.xlu0
        %v492 = vpop.trf.xlu0
        %v493 = vpop.trf.xlu0
        %v494 = vpop.trf.xlu0
        %v495 = vpop.trf.xlu0
        %v496 = vpop.trf.xlu0
        %v497 = vpop.trf.xlu0
        %v498 = vpop.trf.xlu0
        %v499 = vpop.trf.xlu0
        %vm500 = vcmask 130048
        %v502 = vsel %vm500, %v484, 0
        %v505 = vsel %vm500, %v485, 0
        %v508 = vsel %vm500, %v486, 0
        %v511 = vsel %vm500, %v487, 0
        %513 = vmatpush.msra.mxu0 0.0
        %514 = vmatpush.msra.mxu0 0.0
        %515 = vmatpush.msra.mxu0 0.0
        %516 = vmatpush.msra.mxu0 0.0
        %517 = vmatpush.msra.mxu0 0.0
        %518 = vmatpush.msra.mxu0 0.0
        %519 = vmatpush.msra.mxu0 0.0
        %520 = vmatpush.msra.mxu0 0.0
        %521 = vmatpush.msra.mxu0 0.0
        %522 = vmatpush.msra.mxu0 0.0
        %523 = vmatpush.msra.mxu0 0.0
        %524 = vmatpush.msra.mxu0 0.0
        %525 = vmatpush.msra.mxu0 0.0
        %526 = vmatpush.msra.mxu0 0.0
        %527 = vmatpush.msra.mxu0 %v465
        %528 = vmatpush.msra.mxu0 %v461
        %529 = vmatmul.f32.gmra.mxu0 %v502
        %v530 = vpop.f32.mrf.mxu0
        %v531 = vadd.f32 0.0, %v530
        %532 = vmatmul.f32.gmra.mxu0 %v505
        %v533 = vpop.f32.mrf.mxu0
        %v534 = vadd.f32 0.0, %v533
        %535 = vmatmul.f32.gmra.mxu0 %v508
        %v536 = vpop.f32.mrf.mxu0
        %v537 = vadd.f32 0.0, %v536
        %538 = vmatmul.f32.gmra.mxu0 %v511
        %v539 = vpop.f32.mrf.mxu0
        %v540 = vadd.f32 0.0, %v539
        %541 = vdwg.mxu0
        %542 = vmatpush.msra.mxu0 0.0
        %543 = vmatpush.msra.mxu0 0.0
        %544 = vmatpush.msra.mxu0 0.0
        %545 = vmatpush.msra.mxu0 0.0
        %546 = vmatpush.msra.mxu0 0.0
        %547 = vmatpush.msra.mxu0 0.0
        %548 = vmatpush.msra.mxu0 0.0
        %549 = vmatpush.msra.mxu0 0.0
        %550 = vmatpush.msra.mxu0 0.0
        %551 = vmatpush.msra.mxu0 0.0
        %552 = vmatpush.msra.mxu0 0.0
        %553 = vmatpush.msra.mxu0 0.0
        %554 = vmatpush.msra.mxu0 0.0
        %555 = vmatpush.msra.mxu0 0.0
        %556 = vmatpush.msra.mxu0 %v467
        %557 = vmatpush.msra.mxu0 %v463
        %558 = vmatmul.f32.gmra.mxu0 %v502
        %v559 = vpop.f32.mrf.mxu0
        %v560 = vadd.f32 0.0, %v559
        %561 = vmatmul.f32.gmra.mxu0 %v505
        %v562 = vpop.f32.mrf.mxu0
        %v563 = vadd.f32 0.0, %v562
        %564 = vmatmul.f32.gmra.mxu0 %v508
        %v565 = vpop.f32.mrf.mxu0
        %v566 = vadd.f32 0.0, %v565
        %567 = vmatmul.f32.gmra.mxu0 %v511
        %v568 = vpop.f32.mrf.mxu0
        %v569 = vadd.f32 0.0, %v568
        %570 = vdwg.mxu0
        %v571 = vmul.f32 %v531, %v531
        %v572 = vmul.f32 %v560, %v560
        %v573 = vmul.f32 %v534, %v534
        %v574 = vmul.f32 %v563, %v563
        %v575 = vmul.f32 %v537, %v537
        %v576 = vmul.f32 %v566, %v566
        %v577 = vmul.f32 %v540, %v540
        %v578 = vmul.f32 %v569, %v569
        %v579 = vadd.f32 %v571, %v573
        %v580 = vadd.f32 %v579, %v575
        %v581 = vadd.f32 %v580, %v577
        %v582 = vrot.slane %v581, 4
        %v583 = vadd.f32 %v581, %v582
        %v584 = vrot.slane %v583, 2
        %v585 = vadd.f32 %v583, %v584
        %v586 = vrot.slane %v585, 1
        %v587 = vadd.f32 %v585, %v586
        %v588 = vadd.f32 %v572, %v574
        %v589 = vadd.f32 %v588, %v576
        %v590 = vadd.f32 %v589, %v578
        %v591 = vrot.slane %v590, 4
        %v592 = vadd.f32 %v590, %v591
        %v593 = vrot.slane %v592, 2
        %v594 = vadd.f32 %v592, %v593
        %v595 = vrot.slane %v594, 1
        %v596 = vadd.f32 %v594, %v595
        %v597 = vmax.f32 %v587, 1e-24
        %v598 = vmax.f32 %v596, 1e-24
        %v599 = vrsqrt.pop %v597
        %v600 = vmul.f32 %v599, %v597
        %v601 = vmul.f32 %v600, %v599
        %v602 = vmul.f32 0.5, %v601
        %v603 = vsub.f32 1.5, %v602
        %v604 = vmul.f32 %v599, %v603
        %vm605 = vweird.f32 %v597
        %vm606 = vweird.f32 %v599
        %vm607 = vmor %vm605, %vm606
        %v608 = vsel %vm607, %v599, %v604
        %v609 = vrsqrt.pop %v598
        %v610 = vmul.f32 %v609, %v598
        %v611 = vmul.f32 %v610, %v609
        %v612 = vmul.f32 0.5, %v611
        %v613 = vsub.f32 1.5, %v612
        %v614 = vmul.f32 %v609, %v613
        %vm615 = vweird.f32 %v598
        %vm616 = vweird.f32 %v609
        %vm617 = vmor %vm615, %vm616
        %v618 = vsel %vm617, %v609, %v614
        %v619 = vmul.f32 %v531, %v608
        %v620 = vmul.f32 %v560, %v618
        %v621 = vmul.f32 %v534, %v608
        %v622 = vmul.f32 %v563, %v618
        %v623 = vmul.f32 %v537, %v608
        %v624 = vmul.f32 %v566, %v618
        %v625 = vmul.f32 %v540, %v608
        %v626 = vmul.f32 %v569, %v618
        %627 = vst [vmem:[%s211] sm:$0xff] %v619
        %628 = vst [vmem:[%s211 + $0x8] sm:$0xff] %v620
        %629 = vst [vmem:[%s211 + $0x10] sm:$0xff] %v621
        %630 = vst [vmem:[%s211 + $0x18] sm:$0xff] %v622
        %631 = vst [vmem:[%s211 + $0x20] sm:$0xff] %v623
        %632 = vst [vmem:[%s211 + $0x28] sm:$0xff] %v624
        %633 = vst [vmem:[%s211 + $0x30] sm:$0xff] %v625
        %634 = vst [vmem:[%s211 + $0x38] sm:$0xff] %v626
        %v635 = vmul.f32 %v233, %v233
        %v636 = vmul.f32 %v234, %v234
        %v637 = vmul.f32 %v235, %v235
        %v638 = vmul.f32 %v236, %v236
        %v639 = vmul.f32 %v237, %v237
        %v640 = vmul.f32 %v238, %v238
        %v641 = vmul.f32 %v239, %v239
        %v642 = vmul.f32 %v240, %v240
        %v643 = vadd.f32 %v635, %v636
        %644 = vadd.xlane.f32.xlu0 %v643
        %v645 = vpop.xlane.xlu0 %644
        %v646 = vadd.f32 %v637, %v638
        %647 = vadd.xlane.f32.xlu0 %v646
        %v648 = vpop.xlane.xlu0 %647
        %v649 = vadd.f32 %v639, %v640
        %650 = vadd.xlane.f32.xlu0 %v649
        %v651 = vpop.xlane.xlu0 %650
        %v652 = vadd.f32 %v641, %v642
        %653 = vadd.xlane.f32.xlu0 %v652
        %v654 = vpop.xlane.xlu0 %653
        %v655 = vadd.f32 %v645, %v648
        %v656 = vadd.f32 %v655, %v651
        %v657 = vadd.f32 %v656, %v654
        %v658 = vrot.slane %v657, 4
        %v659 = vadd.f32 %v657, %v658
        %v660 = vrot.slane %v659, 2
        %v661 = vadd.f32 %v659, %v660
        %v662 = vrot.slane %v661, 1
        %v663 = vadd.f32 %v661, %v662
        %v664 = vadd.f32 %v663, 256.0
        %v665 = vadd.f32 %v448, %v455
        %666 = vadd.xlane.f32.xlu0 %v665
        %v667 = vpop.xlane.xlu0 %666
        %v668 = vadd.f32 %v667, 0.0
        %v669 = vmul.f32 %v668, 2.0
        %v670 = vsub.f32 %v664, %v669
        %671 = vmatpush.xpose.msra.mxu0 0.0
        %672 = vmatpush.xpose.msra.mxu0 0.0
        %673 = vmatpush.xpose.msra.mxu0 0.0
        %674 = vmatpush.xpose.msra.mxu0 0.0
        %675 = vmatpush.xpose.msra.mxu0 0.0
        %676 = vmatpush.xpose.msra.mxu0 0.0
        %677 = vmatpush.xpose.msra.mxu0 0.0
        %678 = vmatpush.xpose.msra.mxu0 0.0
        %679 = vmatpush.xpose.msra.mxu0 0.0
        %680 = vmatpush.xpose.msra.mxu0 0.0
        %681 = vmatpush.xpose.msra.mxu0 0.0
        %682 = vmatpush.xpose.msra.mxu0 0.0
        %683 = vmatpush.xpose.msra.mxu0 0.0
        %684 = vmatpush.xpose.msra.mxu0 0.0
        %685 = vmatpush.xpose.msra.mxu0 %v394
        %686 = vmatpush.xpose.msra.mxu0 %v391
        %687 = vmatmul.f32.gmra.mxu0 %v391
        %v688 = vpop.f32.mrf.mxu0
        %v689 = vadd.f32 0.0, %v688
        %690 = vmatmul.f32.gmra.mxu0 %v394
        %v691 = vpop.f32.mrf.mxu0
        %v692 = vadd.f32 0.0, %v691
        %693 = vdwg.mxu0
        %v694 = vmul.f32 %v689, 2.0
        %v695 = vmul.f32 %v692, 2.0
        %v696 = vsub.f32 %v694, 1.0
        %v697 = vsub.f32 %v695, 1.0
        %vm698 = vcmp.gt.f32.partialorder %v696, 0.0
        %vm699 = vcmp.gt.f32.partialorder %v697, 0.0
        %vm700 = vmand %vm698, %vm225
        %vm701 = vmand %vm699, %vm226
        %v702 = vsel %vm700, %v696, 0.0
        %v703 = vsel %vm701, %v697, 0.0
        %v704 = vsel %vm500, %v702, 0.0
        %705 = vadd.xlane.f32.xlu0 %v704
        %v706 = vpop.xlane.xlu0 %705
        %v707 = vsel %vm500, %v703, 0.0
        %708 = vadd.xlane.f32.xlu0 %v707
        %v709 = vpop.xlane.xlu0 %708
        %v710 = vadd.f32 %v706, %v709
        %v711 = vrot.slane %v710, 4
        %v712 = vadd.f32 %v710, %v711
        %v713 = vrot.slane %v712, 2
        %v714 = vadd.f32 %v712, %v713
        %v715 = vrot.slane %v714, 1
        %v716 = vadd.f32 %v714, %v715
        %v717 = vmul.f32 %v716, 0.008333334
        %v718 = vmul.f32 %v670, %v229
        %v719 = vmul.f32 %v717, %v232
        %v720 = vadd.f32 %v718, %v719
        %721 = vst [vmem:[%s217] sm:$0x1] %v720
        %s722 = sand.u32 %s80, 1
        %s723 = scalar_lea.sflag [#allocation4], %s722
        %s724 = sand.u32 %s80, 1
        %s725 = smul.addr %s724, 64
        %s726 = scalar_lea.vmem [#allocation7], %s725
        %s727 = sand.u32 %s106, 1
        %s728 = scalar_lea.sflag [#allocation9], %s727
        %s729 = sand.u32 %s106, 1
        %s730 = scalar_lea.vmem [#allocation8], %s729
        // Predicated region
        $region37: #{tpu_custom_call.1} parent=27 // pred_check
          %p731 = pneg %p90
        $region38: #{tpu_custom_call.1} parent=27 // pred_check_branch
          %733 = sbr.rel (%p731) target = $region40
        $region39: #{tpu_custom_call.1} parent=27 // pred_region
          %735 = vsyncadd %s723, 0
          %s736 = smul.addr %s25, 8
          %s737 = smul.addr %s736, 8
          %s738 = scalar_lea.hbm %s2, %s737
          %s739 = sshll.u32 %s726, 4
          %s740 = int_to_ptr.vmem [resolvable:$true] %s739
          %s741 = sshll.u32 %s738, 4
          %s742 = int_to_ptr.hbm [resolvable:$true] %s741
          %747 = dma.vmem_to_hbm [thread:$0]  %s740, 1024, %s742, %s723, 256, 256, 16
        $region40: #{tpu_custom_call.1} parent=27 // pred_fallthru
          _
        // Predicated region
        $region41: #{tpu_custom_call.1} parent=27 // pred_check
          %p748 = pneg %p116
        $region42: #{tpu_custom_call.1} parent=27 // pred_check_branch
          %750 = sbr.rel (%p748) target = $region44
        $region43: #{tpu_custom_call.1} parent=27 // pred_region
          %752 = vsyncadd %s728, 0
          %s753 = scalar_lea.hbm %s3, %s25
          %s755 = sshll.u32 %s730, 4
          %s756 = int_to_ptr.vmem [resolvable:$true] %s755
          %s757 = sshll.u32 %s753, 4
          %s758 = int_to_ptr.hbm [resolvable:$true] %s757
          %760 = dma.vmem_to_hbm [thread:$0]  %s756, 16, %s758, %s728
        $region44: #{tpu_custom_call.1} parent=27 // pred_fallthru
          _
      $region28: #{tpu_custom_call.1} parent=5 // pred_fallthru
        _
      %p761 = scmp.le.s32.totalorder 2, %s20
      // Predicated region
      $region45: #{tpu_custom_call.1} parent=5 // pred_check
        %p762 = pneg %p761
      $region46: #{tpu_custom_call.1} parent=5 // pred_check_branch
        %764 = sbr.rel (%p762) target = $region48
      $region47: #{tpu_custom_call.1} parent=5 // pred_region
        %s765 = ssub.s32 %s20, 2
        // Predicated region
        $region49: #{tpu_custom_call.1} parent=47 // pred_check
          %p766 = pneg %p96
        $region50: #{tpu_custom_call.1} parent=47 // pred_check_branch
          %768 = sbr.rel (%p766) target = $region52
        $region51: #{tpu_custom_call.1} parent=47 // pred_region
          %s769 = sand.u32 %s81, 1
          %s770 = scalar_lea.sflag [#allocation4], %s769
          %s771 = sand.u32 %s81, 1
          %s772 = smul.addr %s771, 64
          %s773 = scalar_lea.vmem [#allocation7], %s772
          %775 = dma.done %s770, 1024
        $region52: #{tpu_custom_call.1} parent=47 // pred_fallthru
          _
        // Predicated region
        $region53: #{tpu_custom_call.1} parent=47 // pred_check
          %p776 = pneg %p122
        $region54: #{tpu_custom_call.1} parent=47 // pred_check_branch
          %778 = sbr.rel (%p776) target = $region56
        $region55: #{tpu_custom_call.1} parent=47 // pred_region
          %s779 = sand.u32 %s107, 1
          %s780 = scalar_lea.sflag [#allocation9], %s779
          %s781 = sand.u32 %s107, 1
          %s782 = scalar_lea.vmem [#allocation8], %s781
          %784 = dma.done %s780, 16
        $region56: #{tpu_custom_call.1} parent=47 // pred_fallthru
          _
      $region48: #{tpu_custom_call.1} parent=5 // pred_fallthru
        _
    $region6: #{tpu_custom_call.1} parent=1 // loop_footer
      %s24 = sadd.s32 1, %s20
    $region7: #{tpu_custom_call.1} parent=1 // loop_footer_branch
      %19 = sbr.rel target = $region3
    $region8: #{tpu_custom_call.1} parent=1 // loop_exit
      _
    %785 = vsyncpa [#allocation3], 1
    %s786 = scalar_lea.sflag [#allocation3], 1
    %787 = vsyncpa %s786, 1
    %788 = vsyncpa [#allocation6], 1
    %789 = vsyncpa [#allocation4], 1
    %s790 = scalar_lea.sflag [#allocation4], 1
    %791 = vsyncpa %s790, 1
    %792 = vsyncpa [#allocation9], 1
    %s793 = scalar_lea.sflag [#allocation9], 1
    %794 = vsyncpa %s793, 1

</llo_original>
